<compile_context>
chip_gen: v7x
topology: tpu7x:2x2x1
jax: 0.10.0
libtpu: 0.0.40
codegen_flags: <defaults>
</compile_context>

<pallas_src>
import functools

import jax
import jax.numpy as jnp
from jax.experimental import pallas as pl
from jax.experimental.pallas import tpu as pltpu

BN_EPS = 1e-5
BN_MOMENTUM = 0.1


# ------------------------------ Pallas kernels ------------------------------
def _bn_train_fused_kernel(x_ref, gb_ref, o_ref, mv_ref, *, eps, k, hw):
    """Single-pass training BN on one channel-group block (full batch resident).

    x_ref : (N, cg, k*hw)  native dtype (k adjacent channels folded onto lanes)
    gb_ref: (cg, 2k) f32   columns [:k]=gain, [k:]=bias (per channel)
    o_ref : (N, cg, k*hw)  same dtype as x
    mv_ref: (cg, 2k) f32   columns [:k]=batch mean, [k:]=biased batch var
    """
    x = x_ref[...].astype(jnp.float32)
    inv_n = 1.0 / float(x.shape[0] * hw)          # elements per channel = N * H*W

    s1_parts, s2_parts = [], []
    for c in range(k):                            # static lane segments (one per folded channel)
        seg = x[:, :, c * hw:(c + 1) * hw]        # (N, cg, hw)
        s1_parts.append(jnp.sum(jnp.sum(seg, axis=2, keepdims=True), axis=0))        # (cg, 1)
        s2_parts.append(jnp.sum(jnp.sum(seg * seg, axis=2, keepdims=True), axis=0))  # (cg, 1)
    s1 = jnp.concatenate(s1_parts, axis=1)        # (cg, k)
    s2 = jnp.concatenate(s2_parts, axis=1)

    mean = s1 * inv_n
    var = jnp.maximum(s2 * inv_n - mean * mean, 0.0)   # clamp catastrophic cancellation

    gb = gb_ref[...]
    gain, bias = gb[:, :k], gb[:, k:]
    scale = jax.lax.rsqrt(var + eps) * gain       # (cg, k)
    shift = mean * scale - bias

    cg = x.shape[1]
    scale_l = jnp.broadcast_to(scale[:, :, None], (cg, k, hw)).reshape(cg, k * hw)
    shift_l = jnp.broadcast_to(shift[:, :, None], (cg, k, hw)).reshape(cg, k * hw)

    o_ref[...] = (x * scale_l[None] - shift_l[None]).astype(o_ref.dtype)   # lane-dense store
    mv_ref[...] = jnp.concatenate([mean, var], axis=1)


def _bn_stats_kernel(x_ref, mv_ref, s1_sc, s2_sc, *, k, hw, inv_n):
    """Streaming batch-stats: grid = (group blocks [parallel], batch blocks [arbitrary])."""
    n_i = pl.program_id(1)

    @pl.when(n_i == 0)
    def _():
        s1_sc[...] = jnp.zeros_like(s1_sc)
        s2_sc[...] = jnp.zeros_like(s2_sc)

    x = x_ref[...].astype(jnp.float32)            # (n_blk, cg, k*hw)
    s1_parts, s2_parts = [], []
    for c in range(k):
        seg = x[:, :, c * hw:(c + 1) * hw]
        s1_parts.append(jnp.sum(jnp.sum(seg, axis=2, keepdims=True), axis=0))
        s2_parts.append(jnp.sum(jnp.sum(seg * seg, axis=2, keepdims=True), axis=0))
    s1_sc[...] += jnp.concatenate(s1_parts, axis=1)
    s2_sc[...] += jnp.concatenate(s2_parts, axis=1)

    @pl.when(n_i == pl.num_programs(1) - 1)
    def _():
        mean = s1_sc[...] * inv_n
        var = jnp.maximum(s2_sc[...] * inv_n - mean * mean, 0.0)
        mv_ref[...] = jnp.concatenate([mean, var], axis=1)


def _bn_apply_kernel(x_ref, ss_ref, o_ref, *, k, hw):
    """Normalize with precomputed per-channel scale/shift (eval, or 2nd streaming pass)."""
    x = x_ref[...].astype(jnp.float32)
    ss = ss_ref[...]                              # (cg, 2k): [:k]=scale, [k:]=shift
    scale, shift = ss[:, :k], ss[:, k:]
    cg = scale.shape[0]
    scale_l = jnp.broadcast_to(scale[:, :, None], (cg, k, hw)).reshape(cg, k * hw)
    shift_l = jnp.broadcast_to(shift[:, :, None], (cg, k, hw)).reshape(cg, k * hw)
    o_ref[...] = (x * scale_l[None] - shift_l[None]).astype(o_ref.dtype)


# ------------------------------ tiling helpers ------------------------------
def _vmem_config():
    """Generation-aware (block-selection budget, compiler vmem limit) in bytes."""
    try:
        cap = int(pltpu.get_tpu_info().vmem_capacity_bytes)
    except Exception:
        cap = 64 << 20                            # conservative (v7x-sized) fallback
    if cap >= (100 << 20):                        # v5e / v6e: 128 MiB physical VMEM
        return 64 << 20, 96 << 20
    return 32 << 20, 48 << 20                     # v7x: 64 MiB per TensorCore


def _choose_fold(C, HW):
    """Fold k adjacent channels onto the lane dim so the block's last dim is >= 128."""
    if HW >= 128:
        return 1
    for k in range(2, C + 1):
        if C % k == 0 and k * HW >= 128:
            return k
    return C                                      # tiny layer: fold everything


def _group_block_candidates(G):
    # sublane (2nd-to-last) block dim must be a multiple of 8 or the full extent
    return sorted(d for d in range(1, G + 1)
                  if G % d == 0 and (d % 8 == 0 or d == G))


def _choose_fused_group_block(G, bytes_per_group, budget):
    cands = _group_block_candidates(G)
    fitting = [d for d in cands if d * bytes_per_group <= budget]
    if not fitting:
        return None                               # needs the streaming path
    for steps in (4, 2):                          # keep >=2 (ideally >=4) grid steps: megacore + pipelining
        ok = [d for d in fitting if G // d >= steps]
        if ok:
            return ok[-1]
    return fitting[-1]


def _choose_stream_blocks(G, N, bytes_per_unit, budget):
    cg_blk = _group_block_candidates(G)[0]        # smallest legal channel-group block
    n_divs = sorted(d for d in range(1, N + 1) if N % d == 0)
    fitting = [n for n in n_divs if n * cg_blk * bytes_per_unit <= budget]
    if not fitting:
        # TODO(synk): would additionally need to split the lane (H*W) axis; fall back to n_blk=1.
        return cg_blk, 1
    total_steps = lambda n: (G // cg_blk) * (N // n)
    for steps in (4, 2):
        ok = [n for n in fitting if total_steps(n) >= steps]
        if ok:
            return cg_blk, ok[-1]
    return cg_blk, fitting[-1]


# ------------------------------ pallas_call wrappers ------------------------------
def _bn_batch_stats(x3, k, hw, cg_blk, n_blk, vmem_limit):
    N, G, L = x3.shape
    grid = (G // cg_blk, N // n_blk)
    x_spec = pl.BlockSpec((n_blk, cg_blk, L), lambda g, n: (n, g, 0))
    mv_spec = pl.BlockSpec((cg_blk, 2 * k), lambda g, n: (g, 0))
    return pl.pallas_call(
        functools.partial(_bn_stats_kernel, k=k, hw=hw, inv_n=1.0 / float(N * hw)),
        out_shape=jax.ShapeDtypeStruct((G, 2 * k), jnp.float32),
        grid=grid,
        in_specs=[x_spec],
        out_specs=mv_spec,
        scratch_shapes=[pltpu.VMEM((cg_blk, k), jnp.float32),
                        pltpu.VMEM((cg_blk, k), jnp.float32)],
        compiler_params=pltpu.CompilerParams(
            dimension_semantics=("parallel", "arbitrary"),
            vmem_limit_bytes=vmem_limit),
    )(x3)


def _bn_apply(x3, ss, k, hw, cg_blk, n_blk, vmem_limit):
    N, G, L = x3.shape
    grid = (G // cg_blk, N // n_blk)
    x_spec = pl.BlockSpec((n_blk, cg_blk, L), lambda g, n: (n, g, 0))
    p_spec = pl.BlockSpec((cg_blk, 2 * k), lambda g, n: (g, 0))
    return pl.pallas_call(
        functools.partial(_bn_apply_kernel, k=k, hw=hw),
        out_shape=jax.ShapeDtypeStruct((N, G, L), x3.dtype),
        grid=grid,
        in_specs=[x_spec, p_spec],
        out_specs=x_spec,
        compiler_params=pltpu.CompilerParams(
            dimension_semantics=("parallel", "parallel"),
            vmem_limit_bytes=vmem_limit),
    )(x3, ss)


def bn_forward(x_nchw, gain, bias, stored_mean, stored_var, *,
               training=True, momentum=BN_MOMENTUM, eps=BN_EPS,
               _vmem_budget_override=None):
    """Forward of the PyTorch `bn` module (cross_replica=False, mybn=False).

    Returns (out, new_stored_mean, new_stored_var); buffers unchanged in eval mode.
    Output dtype matches x. x is kept in native NCHW memory order, viewed as
    (N, C//k, k*H*W) so H*W (times the channel fold k) lands on the lane dim.
    """
    N, C, H, W = x_nchw.shape
    HW = H * W
    k = _choose_fold(C, HW)
    G = C // k
    L = k * HW
    x3 = x_nchw.reshape(N, G, L)                  # contiguous view, native dtype
    item = x3.dtype.itemsize

    budget, vmem_limit = _vmem_config()
    if _vmem_budget_override is not None:
        budget = _vmem_budget_override

    # double-buffered in+out tiles + in-kernel f32 working copies (conservative)
    fused_bytes_per_group = N * L * (4 * item + 8)
    unit_bytes = L * (4 * item + 8)               # per (group, sample)

    if training:
        gb = jnp.concatenate(
            [gain.reshape(G, k), bias.reshape(G, k)], axis=1).astype(jnp.float32)
        cg_blk = _choose_fused_group_block(G, fused_bytes_per_group, budget)
        if cg_blk is not None:
            # one-pass fused path: exact per-block stats + normalize in a single read of x
            # (optional: pipeline_mode=pl.Buffered(3) on x_spec if input DMA is exposed on v6e)
            grid = (G // cg_blk,)
            x_spec = pl.BlockSpec((N, cg_blk, L), lambda g: (0, g, 0))
            p_spec = pl.BlockSpec((cg_blk, 2 * k), lambda g: (g, 0))
            out3, mv = pl.pallas_call(
                functools.partial(_bn_train_fused_kernel, eps=eps, k=k, hw=HW),
                out_shape=(jax.ShapeDtypeStruct((N, G, L), x3.dtype),
                           jax.ShapeDtypeStruct((G, 2 * k), jnp.float32)),
                grid=grid,
                in_specs=[x_spec, p_spec],
                out_specs=(x_spec, p_spec),
                compiler_params=pltpu.CompilerParams(
                    dimension_semantics=("parallel",),
                    vmem_limit_bytes=vmem_limit),
            )(x3, gb)
        else:
            # streaming fallback: stats pass (arbitrary batch axis) + normalize pass
            cg_blk, n_blk = _choose_stream_blocks(G, N, unit_bytes, budget)
            mv = _bn_batch_stats(x3, k, HW, cg_blk, n_blk, vmem_limit)
            bmean_s = mv[:, :k].reshape(C)
            bvar_s = mv[:, k:].reshape(C)
            scale_c = gain.astype(jnp.float32) * jax.lax.rsqrt(bvar_s + eps)
            shift_c = bmean_s * scale_c - bias.astype(jnp.float32)
            ss = jnp.concatenate([scale_c.reshape(G, k), shift_c.reshape(G, k)], axis=1)
            out3 = _bn_apply(x3, ss, k, HW, cg_blk, n_blk, vmem_limit)

        bmean = mv[:, :k].reshape(C)
        bvar = mv[:, k:].reshape(C)
        # F.batch_norm running-stat update: EMA with the *unbiased* batch variance
        n_red = N * HW
        unbiased = bvar * (n_red / max(n_red - 1, 1))
        new_mean = (1.0 - momentum) * stored_mean.astype(jnp.float32) + momentum * bmean
        new_var = (1.0 - momentum) * stored_var.astype(jnp.float32) + momentum * unbiased
        return (out3.reshape(N, C, H, W),
                new_mean.astype(stored_mean.dtype),
                new_var.astype(stored_var.dtype))

    # eval mode: per-channel scale/shift precomputed once in the wrapper (C-length XLA ops)
    scale_c = gain.astype(jnp.float32) * jax.lax.rsqrt(stored_var.astype(jnp.float32) + eps)
    shift_c = stored_mean.astype(jnp.float32) * scale_c - bias.astype(jnp.float32)
    ss = jnp.concatenate([scale_c.reshape(G, k), shift_c.reshape(G, k)], axis=1)
    cg_blk = _choose_fused_group_block(G, fused_bytes_per_group, budget)
    if cg_blk is not None:
        n_blk = N
    else:
        cg_blk, n_blk = _choose_stream_blocks(G, N, unit_bytes, budget)
    out3 = _bn_apply(x3, ss, k, HW, cg_blk, n_blk, vmem_limit)
    return out3.reshape(N, C, H, W), stored_mean, stored_var


# ------------------------------ reference & demo ------------------------------
def _ref_train(x, gain, bias, eps=BN_EPS):
    xf = x.astype(jnp.float32)
    m = jnp.mean(xf, axis=(0, 2, 3), keepdims=True)
    v = jnp.mean(xf * xf, axis=(0, 2, 3), keepdims=True) - m * m
    return (xf - m) * jax.lax.rsqrt(v + eps) * gain[None, :, None, None] \
        + bias[None, :, None, None]


def _ref_eval(x, gain, bias, mean, var, eps=BN_EPS):
    xf = x.astype(jnp.float32)
    return (xf - mean[None, :, None, None]) * jax.lax.rsqrt(var[None, :, None, None] + eps) \
        * gain[None, :, None, None] + bias[None, :, None, None]


if __name__ == "__main__":
    key = jax.random.PRNGKey(0)
    kx, kg, kb, kx2, kx3 = jax.random.split(key, 5)

    # --- main demo: batch=2, channels=32, 16x16 spatial (BigGAN-style block), f32 ---
    N, C, H, W = 2, 32, 16, 16
    x = jax.random.normal(kx, (N, C, H, W), dtype=jnp.float32)
    gain = jnp.ones((C,), jnp.float32) + 0.1 * jax.random.normal(kg, (C,), dtype=jnp.float32)
    bias = 0.1 * jax.random.normal(kb, (C,), dtype=jnp.float32)
    stored_mean = jnp.zeros((C,), jnp.float32)
    stored_var = jnp.ones((C,), jnp.float32)

    fwd_train = jax.jit(functools.partial(bn_forward, training=True))
    out, new_mean, new_var = fwd_train(x, gain, bias, stored_mean, stored_var)
    out = jax.block_until_ready(out)
    assert out.shape == (N, C, H, W) and out.dtype == x.dtype
    assert bool(jnp.all(jnp.isfinite(out)))
    assert float(jnp.max(jnp.abs(out - _ref_train(x, gain, bias)))) < 1e-4

    # eval mode with the updated running buffers
    fwd_eval = jax.jit(functools.partial(bn_forward, training=False))
    out_e, _, _ = fwd_eval(x, gain, bias, new_mean, new_var)
    out_e = jax.block_until_ready(out_e)
    assert float(jnp.max(jnp.abs(out_e - _ref_eval(x, gain, bias, new_mean, new_var)))) < 1e-4

    # --- bf16 I/O path (no wrapper up-cast; output stays bf16) ---
    x_bf = x.astype(jnp.bfloat16)
    out_bf, _, _ = fwd_train(x_bf, gain, bias, stored_mean, stored_var)
    out_bf = jax.block_until_ready(out_bf)
    assert out_bf.dtype == jnp.bfloat16
    assert float(jnp.max(jnp.abs(out_bf.astype(jnp.float32) - _ref_train(x_bf, gain, bias)))) < 6e-2

    # --- small-spatial stage (4x4): channels folded onto lanes (k=8 -> lane width 128) ---
    Cs, Hs, Ws = 32, 4, 4
    xs = jax.random.normal(kx2, (2, Cs, Hs, Ws), dtype=jnp.float32)
    gs = jnp.ones((Cs,), jnp.float32) + 0.05 * jax.random.normal(kg, (Cs,), dtype=jnp.float32)
    bs = 0.05 * jax.random.normal(kb, (Cs,), dtype=jnp.float32)
    out_s, _, _ = fwd_train(xs, gs, bs, jnp.zeros((Cs,)), jnp.ones((Cs,)))
    out_s = jax.block_until_ready(out_s)
    assert float(jnp.max(jnp.abs(out_s - _ref_train(xs, gs, bs)))) < 1e-4

    # --- streaming fallback path (forced tiny VMEM budget): stats pass + normalize pass ---
    Nl = 4
    xl = jax.random.normal(kx3, (Nl, C, H, W), dtype=jnp.float32)
    fwd_stream = jax.jit(functools.partial(bn_forward, training=True,
                                           _vmem_budget_override=150_000))
    out_l, _, _ = fwd_stream(xl, gain, bias, stored_mean, stored_var)
    out_l = jax.block_until_ready(out_l)
    assert float(jnp.max(jnp.abs(out_l - _ref_train(xl, gain, bias)))) < 1e-4

    print("KERNEL_OK")
</pallas_src>

<mosaic_0001>
module attributes {stable_mosaic.version = 11 : i64} {
  func.func @_bn_train_fused_kernel(%arg0: i32, %arg1: memref<2x8x256xf32, #tpu.memory_space<vmem>>, %arg2: memref<8x2xf32, #tpu.memory_space<vmem>>, %arg3: memref<2x8x256xf32, #tpu.memory_space<vmem>>, %arg4: memref<8x2xf32, #tpu.memory_space<vmem>>) attributes {dimension_semantics = [#tpu.dimension_semantics<parallel>], iteration_bounds = array<i64: 4>, scalar_prefetch = 0 : i64, scratch_operands = 0 : i64, tpu.core_type = #tpu.core_type<tc>, window_params = [{transform_indices = @transform_0, window_bounds = array<i64: 2, 8, 256>}, {transform_indices = @transform_1, window_bounds = array<i64: 8, 2>}, {transform_indices = @transform_2, window_bounds = array<i64: 2, 8, 256>}, {transform_indices = @transform_3, window_bounds = array<i64: 8, 2>}]} {
    %c0 = arith.constant 0 : index
    %c0_0 = arith.constant 0 : index
    %c0_1 = arith.constant 0 : index
    %0 = vector.load %arg1[%c0, %c0_0, %c0_1] : memref<2x8x256xf32, #tpu.memory_space<vmem>>, vector<2x8x256xf32>
    %cst = arith.constant dense<0.000000e+00> : vector<2x8xf32>
    %1 = vector.multi_reduction <add>, %0, %cst [2] : vector<2x8x256xf32> to vector<2x8xf32>
    %2 = vector.shape_cast %1 : vector<2x8xf32> to vector<2x8x1xf32>
    %cst_2 = arith.constant dense<0.000000e+00> : vector<8x1xf32>
    %3 = vector.multi_reduction <add>, %2, %cst_2 [0] : vector<2x8x1xf32> to vector<8x1xf32>
    %4 = arith.mulf %0, %0 : vector<2x8x256xf32>
    %cst_3 = arith.constant dense<0.000000e+00> : vector<2x8xf32>
    %5 = vector.multi_reduction <add>, %4, %cst_3 [2] : vector<2x8x256xf32> to vector<2x8xf32>
    %6 = vector.shape_cast %5 : vector<2x8xf32> to vector<2x8x1xf32>
    %cst_4 = arith.constant dense<0.000000e+00> : vector<8x1xf32>
    %7 = vector.multi_reduction <add>, %6, %cst_4 [0] : vector<2x8x1xf32> to vector<8x1xf32>
    %cst_5 = arith.constant 0.001953125 : f32
    %8 = vector.broadcast %cst_5 : f32 to vector<8x1xf32>
    %9 = arith.mulf %3, %8 : vector<8x1xf32>
    %cst_6 = arith.constant 0.001953125 : f32
    %10 = vector.broadcast %cst_6 : f32 to vector<8x1xf32>
    %11 = arith.mulf %7, %10 : vector<8x1xf32>
    %12 = arith.mulf %9, %9 : vector<8x1xf32>
    %13 = arith.subf %11, %12 : vector<8x1xf32>
    %cst_7 = arith.constant 0.000000e+00 : f32
    %14 = vector.broadcast %cst_7 : f32 to vector<8x1xf32>
    %15 = arith.maximumf %13, %14 : vector<8x1xf32>
    %c0_8 = arith.constant 0 : index
    %c0_9 = arith.constant 0 : index
    %16 = vector.load %arg2[%c0_8, %c0_9] : memref<8x2xf32, #tpu.memory_space<vmem>>, vector<8x2xf32>
    %17 = vector.extract_strided_slice %16 {offsets = [0, 0], sizes = [8, 1], strides = [1, 1]} : vector<8x2xf32> to vector<8x1xf32>
    %18 = vector.extract_strided_slice %16 {offsets = [0, 1], sizes = [8, 1], strides = [1, 1]} : vector<8x2xf32> to vector<8x1xf32>
    %cst_10 = arith.constant 9.99999974E-6 : f32
    %19 = vector.broadcast %cst_10 : f32 to vector<8x1xf32>
    %20 = arith.addf %15, %19 : vector<8x1xf32>
    %21 = math.rsqrt %20 : vector<8x1xf32>
    %22 = arith.mulf %21, %17 : vector<8x1xf32>
    %23 = arith.mulf %9, %22 : vector<8x1xf32>
    %24 = arith.subf %23, %18 : vector<8x1xf32>
    %25 = vector.shape_cast %22 : vector<8x1xf32> to vector<8x1x1xf32>
    %26 = vector.shape_cast %25 : vector<8x1x1xf32> to vector<8x1x1xf32>
    %27 = vector.broadcast %26 : vector<8x1x1xf32> to vector<8x1x256xf32>
    %28 = vector.shape_cast %27 : vector<8x1x256xf32> to vector<8x256xf32>
    %29 = vector.shape_cast %24 : vector<8x1xf32> to vector<8x1x1xf32>
    %30 = vector.shape_cast %29 : vector<8x1x1xf32> to vector<8x1x1xf32>
    %31 = vector.broadcast %30 : vector<8x1x1xf32> to vector<8x1x256xf32>
    %32 = vector.shape_cast %31 : vector<8x1x256xf32> to vector<8x256xf32>
    %33 = vector.shape_cast %28 : vector<8x256xf32> to vector<1x8x256xf32>
    %34 = vector.broadcast %33 : vector<1x8x256xf32> to vector<2x8x256xf32>
    %35 = arith.mulf %0, %34 : vector<2x8x256xf32>
    %36 = vector.shape_cast %32 : vector<8x256xf32> to vector<1x8x256xf32>
    %37 = vector.broadcast %36 : vector<1x8x256xf32> to vector<2x8x256xf32>
    %38 = arith.subf %35, %37 : vector<2x8x256xf32>
    %c0_11 = arith.constant 0 : index
    %c0_12 = arith.constant 0 : index
    %c0_13 = arith.constant 0 : index
    %39 = vector.load %arg3[%c0_11, %c0_12, %c0_13] : memref<2x8x256xf32, #tpu.memory_space<vmem>>, vector<2x8x256xf32>
    tpu.vector_store %arg3[%c0_11, %c0_12, %c0_13], %38 {strides = array<i32>} : memref<2x8x256xf32, #tpu.memory_space<vmem>>, vector<2x8x256xf32>,
    %40 = tpu.concatenate %9, %15 in 1 : vector<8x1xf32>, vector<8x1xf32> -> vector<8x2xf32>
    %c0_14 = arith.constant 0 : index
    %c0_15 = arith.constant 0 : index
    %41 = vector.load %arg4[%c0_14, %c0_15] : memref<8x2xf32, #tpu.memory_space<vmem>>, vector<8x2xf32>
    tpu.vector_store %arg4[%c0_14, %c0_15], %40 {strides = array<i32>} : memref<8x2xf32, #tpu.memory_space<vmem>>, vector<8x2xf32>,
    return
  }
  func.func @transform_0(%arg0: i32) -> (i32, i32, i32) {
    %c0_i32 = arith.constant 0 : i32
    %c0_i32_0 = arith.constant 0 : i32
    %c0_i32_1 = arith.constant 0 : i32
    return %c0_i32, %arg0, %c0_i32_0 : i32, i32, i32
  }
  func.func @transform_1(%arg0: i32) -> (i32, i32) {
    %c0_i32 = arith.constant 0 : i32
    %c0_i32_0 = arith.constant 0 : i32
    return %arg0, %c0_i32 : i32, i32
  }
  func.func @transform_2(%arg0: i32) -> (i32, i32, i32) {
    %c0_i32 = arith.constant 0 : i32
    %c0_i32_0 = arith.constant 0 : i32
    %c0_i32_1 = arith.constant 0 : i32
    return %c0_i32, %arg0, %c0_i32_0 : i32, i32, i32
  }
  func.func @transform_3(%arg0: i32) -> (i32, i32) {
    %c0_i32 = arith.constant 0 : i32
    %c0_i32_0 = arith.constant 0 : i32
    return %arg0, %c0_i32 : i32, i32
  }
}

</mosaic_0001>

<llo_original>
// kernel: bn_forward.1
$region0: #{bn_forward.1}
  #allocation0 [shape = 'u32[]', space=smem, size = 0x4, offset = 0x4, fixed_abs, tag = 'smem constant byte address 0x4 - core index']
  #allocation1 [shape = 'u32[144,128]{1,0:T(1,128)}', space=vmem, size = 0x12000, scoped, tag = 'internal scratch']
  %s0 = inlined_call_operand.vmem [shape: f32[2,32,256], index: 0, kind: input, shape index: {}]
  %s1 = inlined_call_operand.vmem [shape: f32[32,2], index: 1, kind: input, shape index: {}]
  %s2 = inlined_call_operand.vmem [shape: f32[2,32,256], index: 2, kind: output, shape index: {0}]
  %s3 = inlined_call_operand.vmem [shape: f32[32,2], index: 3, kind: output, shape index: {1}]
  %4 = xla_tuple %s2, %s3
  %s5 = sld [smem:[#allocation0]]
  $region91: #{bn_forward.1} parent=0
    _
  %s7 = ssub.s32 1, %s5
  %s8 = scalar_select 0, %s7, %s5
  $region1: #{bn_forward.1} parent=0
    #allocation2 [shape = 'u8[32768]{0}', space=vmem, size = 0x8000, scoped, tag = 'input window, operand 0']
    #allocation3 [shape = 'u8[32768]{0}', space=vmem, size = 0x8000, scoped, tag = 'output window, operand 0']
    loop: start=0, step=1, limit=6
    $region2: #{bn_forward.1} parent=1 // loop_pre_header
      _
    $region3: #{bn_forward.1} parent=1 // loop_header
      %s10 = sphi 0, %s14
      %p11 = scmp.ge.s32.totalorder %s10, 6
      %s20 = sphi 0, %s22
      %s23 = sphi 0, %s20
      %s24 = sphi 0, %s23
      %s40 = sphi 0, %s24
      %s46 = sphi 0, %s48
      %s49 = sphi 0, %s46
      %s50 = sphi 0, %s49
      %s66 = sphi 0, %s50
      %s72 = sphi 0, %s74
      %s75 = sphi 0, %s72
      %s76 = sphi 0, %s75
      %s92 = sphi 0, %s76
      %s98 = sphi 0, %s100
      %s101 = sphi 0, %s98
      %s102 = sphi 0, %s101
      %s118 = sphi 0, %s102
    $region4: #{bn_forward.1} parent=1 // loop_header_branch
      %13 = sbr.rel (%p11) target = $region8
    $region5: #{bn_forward.1} parent=1 // loop_body
      %s15 = ssub.s32 %s10, 1
      %s16 = ssub.s32 %s10, 2
      %s17 = sadd.s32 %s10, 1
      %s18 = ssub.s32 %s10, %s17
      %p19 = scmp.eq.s32.totalorder %s18, 0
      %s21 = sadd.s32 %s20, 1
      %s22 = scalar_select %p19, %s20, %s21
      %p25 = pneg %p19
      %p26 = scmp.eq.s32.totalorder %s10, 3
      %p27 = por %p25, %p26
      %p28 = scmp.ne.s32.totalorder %s20, %s23
      %p29 = scmp.eq.s32.totalorder %s10, 0
      %p30 = por %p28, %p29
      %p31 = scmp.ne.s32.totalorder %s20, %s23
      %p32 = scmp.eq.s32.totalorder %s15, 3
      %p33 = por %p31, %p32
      %p34 = scmp.ne.s32.totalorder %s23, %s24
      %p35 = scmp.eq.s32.totalorder %s15, 0
      %p36 = por %p34, %p35
      %p37 = scmp.ne.s32.totalorder %s23, %s24
      %p38 = scmp.eq.s32.totalorder %s16, 3
      %p39 = por %p37, %p38
      %p41 = scmp.ne.s32.totalorder %s24, %s40
      %p42 = scmp.eq.s32.totalorder %s16, 0
      %p43 = por %p41, %p42
      %s44 = ssub.s32 %s10, %s17
      %p45 = scmp.eq.s32.totalorder %s44, 0
      %s47 = sadd.s32 %s46, 1
      %s48 = scalar_select %p45, %s46, %s47
      %p51 = pneg %p45
      %p52 = scmp.eq.s32.totalorder %s10, 3
      %p53 = por %p51, %p52
      %p54 = scmp.ne.s32.totalorder %s46, %s49
      %p55 = scmp.eq.s32.totalorder %s10, 0
      %p56 = por %p54, %p55
      %p57 = scmp.ne.s32.totalorder %s46, %s49
      %p58 = scmp.eq.s32.totalorder %s15, 3
      %p59 = por %p57, %p58
      %p60 = scmp.ne.s32.totalorder %s49, %s50
      %p61 = scmp.eq.s32.totalorder %s15, 0
      %p62 = por %p60, %p61
      %p63 = scmp.ne.s32.totalorder %s49, %s50
      %p64 = scmp.eq.s32.totalorder %s16, 3
      %p65 = por %p63, %p64
      %p67 = scmp.ne.s32.totalorder %s50, %s66
      %p68 = scmp.eq.s32.totalorder %s16, 0
      %p69 = por %p67, %p68
      %s70 = ssub.s32 %s10, %s17
      %p71 = scmp.eq.s32.totalorder %s70, 0
      %s73 = sadd.s32 %s72, 1
      %s74 = scalar_select %p71, %s72, %s73
      %p77 = pneg %p71
      %p78 = scmp.eq.s32.totalorder %s10, 3
      %p79 = por %p77, %p78
      %p80 = scmp.ne.s32.totalorder %s72, %s75
      %p81 = scmp.eq.s32.totalorder %s10, 0
      %p82 = por %p80, %p81
      %p83 = scmp.ne.s32.totalorder %s72, %s75
      %p84 = scmp.eq.s32.totalorder %s15, 3
      %p85 = por %p83, %p84
      %p86 = scmp.ne.s32.totalorder %s75, %s76
      %p87 = scmp.eq.s32.totalorder %s15, 0
      %p88 = por %p86, %p87
      %p89 = scmp.ne.s32.totalorder %s75, %s76
      %p90 = scmp.eq.s32.totalorder %s16, 3
      %p91 = por %p89, %p90
      %p93 = scmp.ne.s32.totalorder %s76, %s92
      %p94 = scmp.eq.s32.totalorder %s16, 0
      %p95 = por %p93, %p94
      %s96 = ssub.s32 %s10, %s17
      %p97 = scmp.eq.s32.totalorder %s96, 0
      %s99 = sadd.s32 %s98, 1
      %s100 = scalar_select %p97, %s98, %s99
      %p103 = pneg %p97
      %p104 = scmp.eq.s32.totalorder %s10, 3
      %p105 = por %p103, %p104
      %p106 = scmp.ne.s32.totalorder %s98, %s101
      %p107 = scmp.eq.s32.totalorder %s10, 0
      %p108 = por %p106, %p107
      %p109 = scmp.ne.s32.totalorder %s98, %s101
      %p110 = scmp.eq.s32.totalorder %s15, 3
      %p111 = por %p109, %p110
      %p112 = scmp.ne.s32.totalorder %s101, %s102
      %p113 = scmp.eq.s32.totalorder %s15, 0
      %p114 = por %p112, %p113
      %p115 = scmp.ne.s32.totalorder %s101, %s102
      %p116 = scmp.eq.s32.totalorder %s16, 3
      %p117 = por %p115, %p116
      %p119 = scmp.ne.s32.totalorder %s102, %s118
      %p120 = scmp.eq.s32.totalorder %s16, 0
      %p121 = por %p119, %p120
      %p122 = scmp.le.s32.totalorder 1, %s10
      %p123 = scmp.lt.s32.totalorder %s10, 5
      %p124 = pnand %p122, %p123
      %p125 = pneg %p124
      // Predicated region
      $region9: #{bn_forward.1} parent=5 // pred_check
        _
      $region10: #{bn_forward.1} parent=5 // pred_check_branch
        %127 = sbr.rel (%p124) target = $region12
      $region11: #{bn_forward.1} parent=5 // pred_region
        %s128 = ssub.s32 %s10, 1
      $region12: #{bn_forward.1} parent=5 // pred_fallthru
        _
      %p129 = scmp.lt.s32.totalorder %s10, 4
      // Predicated region
      $region13: #{bn_forward.1} parent=5 // pred_check
        %p130 = pneg %p129
      $region14: #{bn_forward.1} parent=5 // pred_check_branch
        %132 = sbr.rel (%p130) target = $region16
      $region15: #{bn_forward.1} parent=5 // pred_region
        // Predicated region
        $region17: #{bn_forward.1} parent=15 // pred_check
          %p133 = pneg %p30
        $region18: #{bn_forward.1} parent=15 // pred_check_branch
          %135 = sbr.rel (%p133) target = $region20
        $region19: #{bn_forward.1} parent=15 // pred_region
          %s136 = sand.u32 %s20, 1
          %s137 = sand.u32 %s20, 1
          %s138 = smul.addr %s137, 32
          %s139 = scalar_lea.vmem [#allocation2], %s138
          %s140 = smul.addr %s10, 2
          %s141 = smul.addr %s140, 8
          %s142 = scalar_lea.vmem %s0, %s141
          // Predicated region
          $region21: #{bn_forward.1} parent=19 // pred_check
            _
          $region22: #{bn_forward.1} parent=19 // pred_check_branch
            %144 = sbr.rel (0) target = $region24
          $region23: #{bn_forward.1} parent=19 // pred_region
            // Predicated region
            $region25: #{bn_forward.1} parent=23 // pred_check
              _
            $region26: #{bn_forward.1} parent=23 // pred_check_branch
              %146 = sbr.rel (0) target = $region28
            $region27: #{bn_forward.1} parent=23 // pred_region
              loop: start=0, step=1, limit=1
              $region29: #{bn_forward.1} parent=27 // loop_pre_header
                _
              $region30: #{bn_forward.1} parent=27 // loop_header
                %s148 = sphi 0, %s152
                %p149 = scmp.ge.s32.totalorder %s148, 1
                %s153 = sphi %s142, %s142
                %s154 = sphi %s139, %s139
              $region31: #{bn_forward.1} parent=27 // loop_header_branch
                %151 = sbr.rel (%p149) target = $region35
              $region32: #{bn_forward.1} parent=27 // loop_body
                %v155 = vld [vmem:[%s153] sm:$0xff]
                %156 = vst [vmem:[%s154] sm:$0xff] %v155
                %v157 = vld [vmem:[%s153 + $0x8] sm:$0xff]
                %158 = vst [vmem:[%s154 + $0x8] sm:$0xff] %v157
                %v159 = vld [vmem:[%s153 + $0x40] sm:$0xff]
                %160 = vst [vmem:[%s154 + $0x10] sm:$0xff] %v159
                %v161 = vld [vmem:[%s153 + $0x48] sm:$0xff]
                %162 = vst [vmem:[%s154 + $0x18] sm:$0xff] %v161
              $region33: #{bn_forward.1} parent=27 // loop_footer
                %s152 = sadd.s32 1, %s148
              $region34: #{bn_forward.1} parent=27 // loop_footer_branch
                %147 = sbr.rel target = $region30
              $region35: #{bn_forward.1} parent=27 // loop_exit
                _
            $region28: #{bn_forward.1} parent=23 // pred_fallthru
              _
            // Predicated region
            $region36: #{bn_forward.1} parent=23 // pred_check
              _
            $region37: #{bn_forward.1} parent=23 // pred_check_branch
              %164 = sbr.rel target = $region39
            $region38: #{bn_forward.1} parent=23 // pred_region
              _
            $region39: #{bn_forward.1} parent=23 // pred_fallthru
              _
          $region24: #{bn_forward.1} parent=19 // pred_fallthru
            _
          %165 = vnop
        $region20: #{bn_forward.1} parent=15 // pred_fallthru
          _
        // Predicated region
        $region40: #{bn_forward.1} parent=15 // pred_check
          %p166 = pneg %p56
        $region41: #{bn_forward.1} parent=15 // pred_check_branch
          %168 = sbr.rel (%p166) target = $region43
        $region42: #{bn_forward.1} parent=15 // pred_region
          %p169 = scmp.lt.s32.totalorder %s10, 3
          %s170 = scalar_select %p169, %s10, 3
          %s171 = smul.addr %s170, 8
          %s172 = scalar_lea.vmem %s1, %s171
        $region43: #{bn_forward.1} parent=15 // pred_fallthru
          _
      $region16: #{bn_forward.1} parent=5 // pred_fallthru
        _
      %p173 = scmp.le.s32.totalorder 1, %s10
      %p174 = scmp.lt.s32.totalorder %s10, 5
      %p175 = pnand %p173, %p174
      %p176 = pneg %p175
      // Predicated region
      $region44: #{bn_forward.1} parent=5 // pred_check
        _
      $region45: #{bn_forward.1} parent=5 // pred_check_branch
        %178 = sbr.rel (%p175) target = $region47
      $region46: #{bn_forward.1} parent=5 // pred_region
        %s179 = ssub.s32 %s10, 1
        %s180 = sand.u32 %s23, 1
        %s181 = sand.u32 %s23, 1
        %s182 = smul.addr %s181, 32
        %s183 = scalar_lea.vmem [#allocation2], %s182
        // Predicated region
        $region48: #{bn_forward.1} parent=46 // pred_check
          %p184 = pneg %p36
        $region49: #{bn_forward.1} parent=46 // pred_check_branch
          %186 = sbr.rel (%p184) target = $region51
        $region50: #{bn_forward.1} parent=46 // pred_region
          _
        $region51: #{bn_forward.1} parent=46 // pred_fallthru
          _
        %s187 = sand.u32 %s23, 1
        %s188 = sand.u32 %s23, 1
        %s189 = smul.addr %s188, 32
        %s190 = scalar_lea.vmem [#allocation2], %s189
        %p191 = pneg %p36
        %p192 = pneg %p33
        %p193 = scmp.lt.s32.totalorder %s15, 3
        %s194 = scalar_select %p193, %s15, 3
        %s195 = smul.addr %s194, 8
        %s196 = scalar_lea.vmem %s1, %s195
        %p197 = pneg %p62
        %p198 = pneg %p59
        %p199 = pneg %p88
        %p200 = pneg %p85
        %s201 = sand.u32 %s75, 1
        %s202 = sand.u32 %s75, 1
        %s203 = smul.addr %s202, 32
        %s204 = scalar_lea.vmem [#allocation3], %s203
        %p205 = pneg %p114
        %p206 = pneg %p111
        %p207 = scmp.lt.s32.totalorder %s15, 3
        %s208 = scalar_select %p207, %s15, 3
        %s209 = smul.addr %s208, 8
        %s210 = scalar_lea.vmem %s3, %s209
        %p211 = scmp.lt.s32.totalorder %s15, 3
        %s212 = scalar_select %p211, %s15, 3
        %s213 = smul.addr %s212, 8
        %s214 = scalar_lea.vmem %s1, %s213
        %p215 = scmp.lt.s32.totalorder %s15, 3
        %s216 = scalar_select %p215, %s15, 3
        %s217 = smul.addr %s216, 8
        %s218 = scalar_lea.vmem %s3, %s217
        %v219 = vld [vmem:[%s183] sm:$0xff]
        %v220 = vld [vmem:[%s183 + $0x8] sm:$0xff]
        %v221 = vld [vmem:[%s183 + $0x10] sm:$0xff]
        %v222 = vld [vmem:[%s183 + $0x18] sm:$0xff]
        %v223 = vadd.f32 %v219, %v220
        %224 = vadd.xlane.f32.xlu0 %v223
        %v225 = vpop.xlane.xlu0 %224
        %v226 = vadd.f32 %v221, %v222
        %227 = vadd.xlane.f32.xlu0 %v226
        %v228 = vpop.xlane.xlu0 %227
        %v229 = vadd.f32 %v225, %v228
        %v230 = vmul.f32 %v219, %v219
        %v231 = vmul.f32 %v220, %v220
        %v232 = vmul.f32 %v221, %v221
        %v233 = vmul.f32 %v222, %v222
        %v234 = vadd.f32 %v230, %v231
        %235 = vadd.xlane.f32.xlu0 %v234
        %v236 = vpop.xlane.xlu0 %235
        %v237 = vadd.f32 %v232, %v233
        %238 = vadd.xlane.f32.xlu0 %v237
        %v239 = vpop.xlane.xlu0 %238
        %v240 = vadd.f32 %v236, %v239
        %v241 = vmul.f32 %v229, 0.001953125
        %v242 = vmul.f32 %v240, 0.001953125
        %v243 = vmul.f32 %v241, %v241
        %v244 = vsub.f32 %v242, %v243
        %v245 = vmax.f32 %v244, 0.0
        %v246 = vld [vmem:[%s214] sm:$0xff]
        %v247 = vadd.f32 %v245, 1e-05
        %v248 = vrsqrt.pop %v247
        %v249 = vmul.f32 %v248, %v246
        %v250 = vmul.f32 %v241, %v249
        %252 = vrot.lane.b32.xlu0 %v246, 127
        %v253 = vpop.permute.xlu0 %252
        %v255 = vsub.f32 %v250, %v253
        %v257 = vcombine.high %v249, %v249
        %v259 = vunpack.c.l.s4 1966171168
        %v260 = vunpack.c.0.s8 %v259
        %v261 = vlaneseq
        %v262 = vshrl.u32 %v261, 7
        %v263 = vsub.s32 %v260, %v262
        %v264 = vrot.slane %v249, %v263
        %v266 = vunpack.c.l.s4 1966171168
        %v267 = vunpack.c.0.s8 %v266
        %v268 = vlaneseq
        %v269 = vshrl.u32 %v268, 7
        %v270 = vsub.s32 %v267, %v269
        %v271 = vrot.slane %v257, %v270
        %v272 = vcombine.high %v264, %v264
        %v273 = vcombine.high %v271, %v271
        %v275 = vunpack.c.l.s4 1966171168
        %v276 = vunpack.c.0.s8 %v275
        %v277 = vlaneseq
        %v278 = vshrl.u32 %v277, 7
        %v279 = vsub.s32 %v276, %v278
        %v280 = vrot.slane %v264, %v279
        %v282 = vunpack.c.l.s4 1966171168
        %v283 = vunpack.c.0.s8 %v282
        %v284 = vlaneseq
        %v285 = vshrl.u32 %v284, 7
        %v286 = vsub.s32 %v283, %v285
        %v287 = vrot.slane %v271, %v286
        %v289 = vunpack.c.l.s4 1966171168
        %v290 = vunpack.c.0.s8 %v289
        %v291 = vlaneseq
        %v292 = vshrl.u32 %v291, 7
        %v293 = vsub.s32 %v290, %v292
        %v294 = vrot.slane %v272, %v293
        %v296 = vunpack.c.l.s4 1966171168
        %v297 = vunpack.c.0.s8 %v296
        %v298 = vlaneseq
        %v299 = vshrl.u32 %v298, 7
        %v300 = vsub.s32 %v297, %v299
        %v301 = vrot.slane %v273, %v300
        %v302 = vcombine.high %v280, %v280
        %v303 = vcombine.high %v287, %v287
        %v304 = vcombine.high %v294, %v294
        %v305 = vcombine.high %v301, %v301
        %306 = vset.pattern.permute.xlu0 0
        %307 = vperm.xlu0 %306, %v280
        %v308 = vpop.permute.xlu0 %307
        %v310 = vlaneseq
        %v311 = vshrl.u32 %v310, 7
        %v312 = vsub.s32 0, %v311
        %v313 = vrot.slane %v308, %v312
        %314 = vset.pattern.permute.xlu0 0
        %315 = vperm.xlu0 %314, %v294
        %v316 = vpop.permute.xlu0 %315
        %v318 = vlaneseq
        %v319 = vshrl.u32 %v318, 7
        %v320 = vsub.s32 0, %v319
        %v321 = vrot.slane %v316, %v320
        %322 = vset.pattern.permute.xlu0 0
        %323 = vperm.xlu0 %322, %v302
        %v324 = vpop.permute.xlu0 %323
        %v326 = vlaneseq
        %v327 = vshrl.u32 %v326, 7
        %v328 = vsub.s32 0, %v327
        %v329 = vrot.slane %v324, %v328
        %330 = vset.pattern.permute.xlu0 0
        %331 = vperm.xlu0 %330, %v304
        %v332 = vpop.permute.xlu0 %331
        %v334 = vlaneseq
        %v335 = vshrl.u32 %v334, 7
        %v336 = vsub.s32 0, %v335
        %v337 = vrot.slane %v332, %v336
        %338 = vset.pattern.permute.xlu0 0
        %339 = vperm.xlu0 %338, %v287
        %v340 = vpop.permute.xlu0 %339
        %v342 = vlaneseq
        %v343 = vshrl.u32 %v342, 7
        %v344 = vsub.s32 0, %v343
        %v345 = vrot.slane %v340, %v344
        %346 = vset.pattern.permute.xlu0 0
        %347 = vperm.xlu0 %346, %v301
        %v348 = vpop.permute.xlu0 %347
        %v350 = vlaneseq
        %v351 = vshrl.u32 %v350, 7
        %v352 = vsub.s32 0, %v351
        %v353 = vrot.slane %v348, %v352
        %354 = vset.pattern.permute.xlu0 0
        %355 = vperm.xlu0 %354, %v303
        %v356 = vpop.permute.xlu0 %355
        %v358 = vlaneseq
        %v359 = vshrl.u32 %v358, 7
        %v360 = vsub.s32 0, %v359
        %v361 = vrot.slane %v356, %v360
        %362 = vset.pattern.permute.xlu0 0
        %363 = vperm.xlu0 %362, %v305
        %v364 = vpop.permute.xlu0 %363
        %v366 = vlaneseq
        %v367 = vshrl.u32 %v366, 7
        %v368 = vsub.s32 0, %v367
        %v369 = vrot.slane %v364, %v368
        %v371 = vcombine.high %v255, %v255
        %v373 = vunpack.c.l.s4 1966171168
        %v374 = vunpack.c.0.s8 %v373
        %v375 = vlaneseq
        %v376 = vshrl.u32 %v375, 7
        %v377 = vsub.s32 %v374, %v376
        %v378 = vrot.slane %v255, %v377
        %v380 = vunpack.c.l.s4 1966171168
        %v381 = vunpack.c.0.s8 %v380
        %v382 = vlaneseq
        %v383 = vshrl.u32 %v382, 7
        %v384 = vsub.s32 %v381, %v383
        %v385 = vrot.slane %v371, %v384
        %v386 = vcombine.high %v378, %v378
        %v387 = vcombine.high %v385, %v385
        %v389 = vunpack.c.l.s4 1966171168
        %v390 = vunpack.c.0.s8 %v389
        %v391 = vlaneseq
        %v392 = vshrl.u32 %v391, 7
        %v393 = vsub.s32 %v390, %v392
        %v394 = vrot.slane %v378, %v393
        %v396 = vunpack.c.l.s4 1966171168
        %v397 = vunpack.c.0.s8 %v396
        %v398 = vlaneseq
        %v399 = vshrl.u32 %v398, 7
        %v400 = vsub.s32 %v397, %v399
        %v401 = vrot.slane %v385, %v400
        %v403 = vunpack.c.l.s4 1966171168
        %v404 = vunpack.c.0.s8 %v403
        %v405 = vlaneseq
        %v406 = vshrl.u32 %v405, 7
        %v407 = vsub.s32 %v404, %v406
        %v408 = vrot.slane %v386, %v407
        %v410 = vunpack.c.l.s4 1966171168
        %v411 = vunpack.c.0.s8 %v410
        %v412 = vlaneseq
        %v413 = vshrl.u32 %v412, 7
        %v414 = vsub.s32 %v411, %v413
        %v415 = vrot.slane %v387, %v414
        %v416 = vcombine.high %v394, %v394
        %v417 = vcombine.high %v401, %v401
        %v418 = vcombine.high %v408, %v408
        %v419 = vcombine.high %v415, %v415
        %420 = vset.pattern.permute.xlu0 0
        %421 = vperm.xlu0 %420, %v394
        %v422 = vpop.permute.xlu0 %421
        %v424 = vlaneseq
        %v425 = vshrl.u32 %v424, 7
        %v426 = vsub.s32 0, %v425
        %v427 = vrot.slane %v422, %v426
        %428 = vset.pattern.permute.xlu0 0
        %429 = vperm.xlu0 %428, %v408
        %v430 = vpop.permute.xlu0 %429
        %v432 = vlaneseq
        %v433 = vshrl.u32 %v432, 7
        %v434 = vsub.s32 0, %v433
        %v435 = vrot.slane %v430, %v434
        %436 = vset.pattern.permute.xlu0 0
        %437 = vperm.xlu0 %436, %v416
        %v438 = vpop.permute.xlu0 %437
        %v440 = vlaneseq
        %v441 = vshrl.u32 %v440, 7
        %v442 = vsub.s32 0, %v441
        %v443 = vrot.slane %v438, %v442
        %444 = vset.pattern.permute.xlu0 0
        %445 = vperm.xlu0 %444, %v418
        %v446 = vpop.permute.xlu0 %445
        %v448 = vlaneseq
        %v449 = vshrl.u32 %v448, 7
        %v450 = vsub.s32 0, %v449
        %v451 = vrot.slane %v446, %v450
        %452 = vset.pattern.permute.xlu0 0
        %453 = vperm.xlu0 %452, %v401
        %v454 = vpop.permute.xlu0 %453
        %v456 = vlaneseq
        %v457 = vshrl.u32 %v456, 7
        %v458 = vsub.s32 0, %v457
        %v459 = vrot.slane %v454, %v458
        %460 = vset.pattern.permute.xlu0 0
        %461 = vperm.xlu0 %460, %v415
        %v462 = vpop.permute.xlu0 %461
        %v464 = vlaneseq
        %v465 = vshrl.u32 %v464, 7
        %v466 = vsub.s32 0, %v465
        %v467 = vrot.slane %v462, %v466
        %468 = vset.pattern.permute.xlu0 0
        %469 = vperm.xlu0 %468, %v417
        %v470 = vpop.permute.xlu0 %469
        %v472 = vlaneseq
        %v473 = vshrl.u32 %v472, 7
        %v474 = vsub.s32 0, %v473
        %v475 = vrot.slane %v470, %v474
        %476 = vset.pattern.permute.xlu0 0
        %477 = vperm.xlu0 %476, %v419
        %v478 = vpop.permute.xlu0 %477
        %v480 = vlaneseq
        %v481 = vshrl.u32 %v480, 7
        %v482 = vsub.s32 0, %v481
        %v483 = vrot.slane %v478, %v482
        %v492 = vcombine.low %v313, %v321
        %v493 = vcombine.low %v329, %v337
        %v494 = vcombine.low %v345, %v353
        %v495 = vcombine.low %v361, %v369
        %v497 = vunpack.c.l.s4 1966171168
        %v498 = vunpack.c.0.s8 %v497
        %v499 = vlaneseq
        %v500 = vshrl.u32 %v499, 7
        %v501 = vsub.s32 %v498, %v500
        %v502 = vrot.slane %v492, %v501
        %v504 = vunpack.c.l.s4 1966171168
        %v505 = vunpack.c.0.s8 %v504
        %v506 = vlaneseq
        %v507 = vshrl.u32 %v506, 7
        %v508 = vsub.s32 %v505, %v507
        %v509 = vrot.slane %v493, %v508
        %v511 = vunpack.c.l.s4 1966171168
        %v512 = vunpack.c.0.s8 %v511
        %v513 = vlaneseq
        %v514 = vshrl.u32 %v513, 7
        %v515 = vsub.s32 %v512, %v514
        %v516 = vrot.slane %v494, %v515
        %v518 = vunpack.c.l.s4 1966171168
        %v519 = vunpack.c.0.s8 %v518
        %v520 = vlaneseq
        %v521 = vshrl.u32 %v520, 7
        %v522 = vsub.s32 %v519, %v521
        %v523 = vrot.slane %v495, %v522
        %v524 = vcombine.low %v502, %v509
        %v525 = vcombine.high %v502, %v509
        %v526 = vcombine.low %v516, %v523
        %v527 = vcombine.high %v516, %v523
        %v529 = vunpack.c.l.s4 1966171168
        %v530 = vunpack.c.0.s8 %v529
        %v531 = vlaneseq
        %v532 = vshrl.u32 %v531, 7
        %v533 = vsub.s32 %v530, %v532
        %v534 = vrot.slane %v524, %v533
        %v536 = vunpack.c.l.s4 1966171168
        %v537 = vunpack.c.0.s8 %v536
        %v538 = vlaneseq
        %v539 = vshrl.u32 %v538, 7
        %v540 = vsub.s32 %v537, %v539
        %v541 = vrot.slane %v525, %v540
        %v543 = vunpack.c.l.s4 1966171168
        %v544 = vunpack.c.0.s8 %v543
        %v545 = vlaneseq
        %v546 = vshrl.u32 %v545, 7
        %v547 = vsub.s32 %v544, %v546
        %v548 = vrot.slane %v526, %v547
        %v550 = vunpack.c.l.s4 1966171168
        %v551 = vunpack.c.0.s8 %v550
        %v552 = vlaneseq
        %v553 = vshrl.u32 %v552, 7
        %v554 = vsub.s32 %v551, %v553
        %v555 = vrot.slane %v527, %v554
        %v556 = vcombine.low %v534, %v548
        %v557 = vcombine.low %v541, %v555
        %v560 = vmul.f32 %v219, %v556
        %v561 = vmul.f32 %v220, %v557
        %v562 = vmul.f32 %v221, %v556
        %v563 = vmul.f32 %v222, %v557
        %v572 = vcombine.low %v427, %v435
        %v573 = vcombine.low %v443, %v451
        %v574 = vcombine.low %v459, %v467
        %v575 = vcombine.low %v475, %v483
        %v577 = vunpack.c.l.s4 1966171168
        %v578 = vunpack.c.0.s8 %v577
        %v579 = vlaneseq
        %v580 = vshrl.u32 %v579, 7
        %v581 = vsub.s32 %v578, %v580
        %v582 = vrot.slane %v572, %v581
        %v584 = vunpack.c.l.s4 1966171168
        %v585 = vunpack.c.0.s8 %v584
        %v586 = vlaneseq
        %v587 = vshrl.u32 %v586, 7
        %v588 = vsub.s32 %v585, %v587
        %v589 = vrot.slane %v573, %v588
        %v591 = vunpack.c.l.s4 1966171168
        %v592 = vunpack.c.0.s8 %v591
        %v593 = vlaneseq
        %v594 = vshrl.u32 %v593, 7
        %v595 = vsub.s32 %v592, %v594
        %v596 = vrot.slane %v574, %v595
        %v598 = vunpack.c.l.s4 1966171168
        %v599 = vunpack.c.0.s8 %v598
        %v600 = vlaneseq
        %v601 = vshrl.u32 %v600, 7
        %v602 = vsub.s32 %v599, %v601
        %v603 = vrot.slane %v575, %v602
        %v604 = vcombine.low %v582, %v589
        %v605 = vcombine.high %v582, %v589
        %v606 = vcombine.low %v596, %v603
        %v607 = vcombine.high %v596, %v603
        %v609 = vunpack.c.l.s4 1966171168
        %v610 = vunpack.c.0.s8 %v609
        %v611 = vlaneseq
        %v612 = vshrl.u32 %v611, 7
        %v613 = vsub.s32 %v610, %v612
        %v614 = vrot.slane %v604, %v613
        %v616 = vunpack.c.l.s4 1966171168
        %v617 = vunpack.c.0.s8 %v616
        %v618 = vlaneseq
        %v619 = vshrl.u32 %v618, 7
        %v620 = vsub.s32 %v617, %v619
        %v621 = vrot.slane %v605, %v620
        %v623 = vunpack.c.l.s4 1966171168
        %v624 = vunpack.c.0.s8 %v623
        %v625 = vlaneseq
        %v626 = vshrl.u32 %v625, 7
        %v627 = vsub.s32 %v624, %v626
        %v628 = vrot.slane %v606, %v627
        %v630 = vunpack.c.l.s4 1966171168
        %v631 = vunpack.c.0.s8 %v630
        %v632 = vlaneseq
        %v633 = vshrl.u32 %v632, 7
        %v634 = vsub.s32 %v631, %v633
        %v635 = vrot.slane %v607, %v634
        %v636 = vcombine.low %v614, %v628
        %v637 = vcombine.low %v621, %v635
        %v640 = vsub.f32 %v560, %v636
        %v641 = vsub.f32 %v561, %v637
        %v642 = vsub.f32 %v562, %v636
        %v643 = vsub.f32 %v563, %v637
        %644 = vst [vmem:[%s204] sm:$0xff] %v640
        %645 = vst [vmem:[%s204 + $0x8] sm:$0xff] %v641
        %646 = vst [vmem:[%s204 + $0x10] sm:$0xff] %v642
        %647 = vst [vmem:[%s204 + $0x18] sm:$0xff] %v643
        %vm648 = vcmask 7168
        %v649 = vsel %vm648, %v241, %v245
        %vm650 = vcmask 15360
        %651 = vst.msk [vmem:[%s218] sm:$0xff] %vm650, %v649
        %s652 = sand.u32 %s75, 1
        %s653 = sand.u32 %s75, 1
        %s654 = smul.addr %s653, 32
        %s655 = scalar_lea.vmem [#allocation3], %s654
        %p656 = scmp.lt.s32.totalorder %s15, 3
        %s657 = scalar_select %p656, %s15, 3
        %s658 = smul.addr %s657, 8
        %s659 = scalar_lea.vmem %s3, %s658
        // Predicated region
        $region52: #{bn_forward.1} parent=46 // pred_check
          %p660 = pneg %p85
        $region53: #{bn_forward.1} parent=46 // pred_check_branch
          %662 = sbr.rel (%p660) target = $region55
        $region54: #{bn_forward.1} parent=46 // pred_region
          %s663 = smul.addr %s15, 2
          %s664 = smul.addr %s663, 8
          %s665 = scalar_lea.vmem %s2, %s664
          // Predicated region
          $region56: #{bn_forward.1} parent=54 // pred_check
            _
          $region57: #{bn_forward.1} parent=54 // pred_check_branch
            %667 = sbr.rel (0) target = $region59
          $region58: #{bn_forward.1} parent=54 // pred_region
            // Predicated region
            $region60: #{bn_forward.1} parent=58 // pred_check
              _
            $region61: #{bn_forward.1} parent=58 // pred_check_branch
              %669 = sbr.rel (0) target = $region63
            $region62: #{bn_forward.1} parent=58 // pred_region
              loop: start=0, step=1, limit=1
              $region64: #{bn_forward.1} parent=62 // loop_pre_header
                _
              $region65: #{bn_forward.1} parent=62 // loop_header
                %s671 = sphi 0, %s675
                %p672 = scmp.ge.s32.totalorder %s671, 1
                %s676 = sphi %s655, %s655
                %s677 = sphi %s665, %s665
              $region66: #{bn_forward.1} parent=62 // loop_header_branch
                %674 = sbr.rel (%p672) target = $region70
              $region67: #{bn_forward.1} parent=62 // loop_body
                %v678 = vld [vmem:[%s676] sm:$0xff]
                %679 = vst [vmem:[%s677] sm:$0xff] %v678
                %v680 = vld [vmem:[%s676 + $0x8] sm:$0xff]
                %681 = vst [vmem:[%s677 + $0x8] sm:$0xff] %v680
                %v682 = vld [vmem:[%s676 + $0x10] sm:$0xff]
                %683 = vst [vmem:[%s677 + $0x40] sm:$0xff] %v682
                %v684 = vld [vmem:[%s676 + $0x18] sm:$0xff]
                %685 = vst [vmem:[%s677 + $0x48] sm:$0xff] %v684
              $region68: #{bn_forward.1} parent=62 // loop_footer
                %s675 = sadd.s32 1, %s671
              $region69: #{bn_forward.1} parent=62 // loop_footer_branch
                %670 = sbr.rel target = $region65
              $region70: #{bn_forward.1} parent=62 // loop_exit
                _
            $region63: #{bn_forward.1} parent=58 // pred_fallthru
              _
            // Predicated region
            $region71: #{bn_forward.1} parent=58 // pred_check
              _
            $region72: #{bn_forward.1} parent=58 // pred_check_branch
              %687 = sbr.rel target = $region74
            $region73: #{bn_forward.1} parent=58 // pred_region
              _
            $region74: #{bn_forward.1} parent=58 // pred_fallthru
              _
          $region59: #{bn_forward.1} parent=54 // pred_fallthru
            _
          %688 = vnop
        $region55: #{bn_forward.1} parent=46 // pred_fallthru
          _
        // Predicated region
        $region75: #{bn_forward.1} parent=46 // pred_check
          %p689 = pneg %p111
        $region76: #{bn_forward.1} parent=46 // pred_check_branch
          %691 = sbr.rel (%p689) target = $region78
        $region77: #{bn_forward.1} parent=46 // pred_region
          _
        $region78: #{bn_forward.1} parent=46 // pred_fallthru
          _
      $region47: #{bn_forward.1} parent=5 // pred_fallthru
        _
      %p692 = scmp.le.s32.totalorder 2, %s10
      // Predicated region
      $region79: #{bn_forward.1} parent=5 // pred_check
        %p693 = pneg %p692
      $region80: #{bn_forward.1} parent=5 // pred_check_branch
        %695 = sbr.rel (%p693) target = $region82
      $region81: #{bn_forward.1} parent=5 // pred_region
        %s696 = ssub.s32 %s10, 2
        // Predicated region
        $region83: #{bn_forward.1} parent=81 // pred_check
          %p697 = pneg %p91
        $region84: #{bn_forward.1} parent=81 // pred_check_branch
          %699 = sbr.rel (%p697) target = $region86
        $region85: #{bn_forward.1} parent=81 // pred_region
          %s700 = sand.u32 %s76, 1
          %s701 = sand.u32 %s76, 1
          %s702 = smul.addr %s701, 32
          %s703 = scalar_lea.vmem [#allocation3], %s702
        $region86: #{bn_forward.1} parent=81 // pred_fallthru
          _
        // Predicated region
        $region87: #{bn_forward.1} parent=81 // pred_check
          %p704 = pneg %p117
        $region88: #{bn_forward.1} parent=81 // pred_check_branch
          %706 = sbr.rel (%p704) target = $region90
        $region89: #{bn_forward.1} parent=81 // pred_region
          %p707 = scmp.lt.s32.totalorder %s16, 3
          %s708 = scalar_select %p707, %s16, 3
          %s709 = smul.addr %s708, 8
          %s710 = scalar_lea.vmem %s3, %s709
        $region90: #{bn_forward.1} parent=81 // pred_fallthru
          _
      $region82: #{bn_forward.1} parent=5 // pred_fallthru
        _
    $region6: #{bn_forward.1} parent=1 // loop_footer
      %s14 = sadd.s32 1, %s10
    $region7: #{bn_forward.1} parent=1 // loop_footer_branch
      %9 = sbr.rel target = $region3
    $region8: #{bn_forward.1} parent=1 // loop_exit
      _

</llo_original>
